<compile_context>
chip_gen: v6e
topology: v6e:2x2x1
jax: 0.10.0
libtpu: 0.0.40
codegen_flags: <defaults>
</compile_context>

<pallas_src>
import functools

import jax
import jax.numpy as jnp
from jax.experimental import pallas as pl
from jax.experimental.pallas import tpu as pltpu

# Problem sizes implied by the module (env is synthetic here).
N_FEATURES = 4     # env.observation_space.shape[0]
N_ACTIONS = 2      # env.action_space.n
DUELING_DQN = True

HIDDEN_DIMS = [(N_FEATURES, 16), (16, 32), (32, 64), (64, 32), (32, 16)]
HEAD_DIM = (16, 1 + N_ACTIONS)       # fused [V | A] head
N_LAYERS = len(HIDDEN_DIMS) + 1      # 6 matmuls total
WPAD = 64                            # padded feature width (max layer width)


def net_kernel(x_ref, w_ref, b_ref, out_ref, *, batch):
    """x_ref: (B_pad, WPAD), w_ref: (6, WPAD, WPAD), b_ref: (6, 1, WPAD)."""
    h = x_ref[...]                                              # (B_pad, WPAD)

    # Hidden Linear + ReLU chain at uniform padded width (padded lanes stay 0
    # because the corresponding weight columns / bias lanes are zero).
    for i in range(N_LAYERS - 1):                               # static unroll
        h = jnp.maximum(
            jnp.dot(h, w_ref[i], preferred_element_type=jnp.float32) + b_ref[i],
            0.0)

    # Fused dueling head: one matmul producing [V | A] in the first 3 lanes.
    q = jnp.dot(h, w_ref[N_LAYERS - 1],
                preferred_element_type=jnp.float32) + b_ref[N_LAYERS - 1]
    v = q[:, 0:1]                                               # (B_pad, 1)
    a = q[:, 1:1 + N_ACTIONS]                                   # (B_pad, A)

    # torch.mean(A): GLOBAL mean over (valid batch rows) x actions.
    # `batch` is a Python constant, so the slice and reciprocal are static.
    a_mean = jnp.sum(a[:batch, :]) * (1.0 / float(batch * N_ACTIONS))

    out_ref[...] = v + (a - a_mean)


def init_params(key):
    """Deterministic parameters matching the PyTorch module's shapes.

    PyTorch Linear weight is (out, in); weights for lin1..lin5 use normal(0,
    0.1), biases use the default uniform(-1/sqrt(fan_in), 1/sqrt(fan_in)).
    Weights are returned already transposed to (in, out).
    """
    dims = HIDDEN_DIMS + [(16, 1), (16, N_ACTIONS)]
    names = ["1", "2", "3", "4", "5", "v", "a"]
    params = {}
    for (fan_in, fan_out), name in zip(dims, names):
        key, kw, kb = jax.random.split(key, 3)
        w = 0.1 * jax.random.normal(kw, (fan_out, fan_in), dtype=jnp.float32)
        bound = 1.0 / jnp.sqrt(jnp.float32(fan_in))
        b = jax.random.uniform(kb, (1, fan_out), dtype=jnp.float32,
                               minval=-bound, maxval=bound)
        params["w" + name] = w.T          # (in, out)
        params["b" + name] = b            # (1, out)
    return params


def pack_params(params):
    """Pack all layers into two stacked, zero-padded tensors.

    Returns w_stack (6, WPAD, WPAD) and b_stack (6, 1, WPAD).  Zero padding
    keeps unused lanes exactly 0 through every Linear+ReLU, so no in-kernel
    slicing of weights is required and only 2 parameter DMAs are issued.
    """
    ws, bs = [], []
    for (fi, fo), name in zip(HIDDEN_DIMS, ["1", "2", "3", "4", "5"]):
        ws.append(jnp.zeros((WPAD, WPAD), jnp.float32)
                  .at[:fi, :fo].set(params["w" + name]))
        bs.append(jnp.zeros((1, WPAD), jnp.float32)
                  .at[:, :fo].set(params["b" + name]))
    # Fused [V | A] head.
    w_head = jnp.concatenate([params["wv"], params["wa"]], axis=1)  # (16, 3)
    b_head = jnp.concatenate([params["bv"], params["ba"]], axis=1)  # (1, 3)
    ws.append(jnp.zeros((WPAD, WPAD), jnp.float32)
              .at[:HEAD_DIM[0], :HEAD_DIM[1]].set(w_head))
    bs.append(jnp.zeros((1, WPAD), jnp.float32)
              .at[:, :HEAD_DIM[1]].set(b_head))
    return jnp.stack(ws, axis=0), jnp.stack(bs, axis=0)


def net_forward(x, params):
    B = x.shape[0]
    B_pad = max(8, ((B + 7) // 8) * 8)      # fill sublanes; padded rows dropped

    x_pad = jnp.zeros((B_pad, WPAD), jnp.float32).at[:B, :N_FEATURES].set(x)
    w_stack, b_stack = pack_params(params)

    vmem = pl.BlockSpec(memory_space=pltpu.MemorySpace.VMEM)
    out = pl.pallas_call(
        functools.partial(net_kernel, batch=B),
        out_shape=jax.ShapeDtypeStruct((B_pad, N_ACTIONS), jnp.float32),
        in_specs=[vmem, vmem, vmem],
        out_specs=vmem,
    )(x_pad, w_stack, b_stack)
    return out[:B]


def net_forward_ref(x, params):
    """Pure-JAX reference mirroring the PyTorch forward exactly."""
    h = x
    for name in ["1", "2", "3", "4", "5"]:
        h = jnp.maximum(h @ params["w" + name] + params["b" + name], 0.0)
    v = h @ params["wv"] + params["bv"]
    a = h @ params["wa"] + params["ba"]
    return v + (a - jnp.mean(a))


if __name__ == "__main__":
    key = jax.random.PRNGKey(0)
    key, kx = jax.random.split(key)
    batch = 2
    x = jax.random.normal(kx, (batch, N_FEATURES), dtype=jnp.float32)

    params = init_params(key)

    q = net_forward(x, params)
    q = jax.block_until_ready(q)

    q_ref = net_forward_ref(x, params)
    assert q.shape == (batch, N_ACTIONS)
    assert jnp.allclose(q, q_ref, atol=1e-5, rtol=1e-5), (q, q_ref)

    print("KERNEL_OK")
</pallas_src>

<mosaic_0001>
module attributes {stable_mosaic.version = 11 : i64} {
  func.func @net_kernel(%arg0: memref<8x64xf32, #tpu.memory_space<vmem>>, %arg1: memref<6x64x64xf32, #tpu.memory_space<vmem>>, %arg2: memref<6x1x64xf32, #tpu.memory_space<vmem>>, %arg3: memref<8x2xf32, #tpu.memory_space<vmem>>) attributes {dimension_semantics = [], scalar_prefetch = 0 : i64, scratch_operands = 0 : i64, tpu.core_type = #tpu.core_type<tc>} {
    %c0 = arith.constant 0 : index
    %c0_0 = arith.constant 0 : index
    %0 = vector.load %arg0[%c0, %c0_0] : memref<8x64xf32, #tpu.memory_space<vmem>>, vector<8x64xf32>
    %c0_1 = arith.constant 0 : index
    %c0_2 = arith.constant 0 : index
    %c0_3 = arith.constant 0 : index
    %1 = vector.load %arg1[%c0_1, %c0_2, %c0_3] : memref<6x64x64xf32, #tpu.memory_space<vmem>>, vector<1x64x64xf32>
    %2 = vector.shape_cast %1 : vector<1x64x64xf32> to vector<64x64xf32>
    %cst = arith.constant dense<0.000000e+00> : vector<8x64xf32>
    %3 = tpu.matmul %0, %2, %cst {dimension_numbers = #tpu.dot_dimension_numbers<[1], [0], [0], [1], [0, 0, 1, 1], [], []>} : vector<8x64xf32>, vector<64x64xf32>, vector<8x64xf32> -> vector<8x64xf32>
    %c0_4 = arith.constant 0 : index
    %c0_5 = arith.constant 0 : index
    %c0_6 = arith.constant 0 : index
    %4 = vector.load %arg2[%c0_4, %c0_5, %c0_6] : memref<6x1x64xf32, #tpu.memory_space<vmem>>, vector<1x1x64xf32>
    %5 = vector.shape_cast %4 : vector<1x1x64xf32> to vector<1x64xf32>
    %6 = vector.broadcast %5 : vector<1x64xf32> to vector<8x64xf32>
    %7 = arith.addf %3, %6 : vector<8x64xf32>
    %cst_7 = arith.constant 0.000000e+00 : f32
    %8 = vector.broadcast %cst_7 : f32 to vector<8x64xf32>
    %9 = arith.maximumf %7, %8 : vector<8x64xf32>
    %c1 = arith.constant 1 : index
    %c0_8 = arith.constant 0 : index
    %c0_9 = arith.constant 0 : index
    %10 = vector.load %arg1[%c1, %c0_8, %c0_9] : memref<6x64x64xf32, #tpu.memory_space<vmem>>, vector<1x64x64xf32>
    %11 = vector.shape_cast %10 : vector<1x64x64xf32> to vector<64x64xf32>
    %cst_10 = arith.constant dense<0.000000e+00> : vector<8x64xf32>
    %12 = tpu.matmul %9, %11, %cst_10 {dimension_numbers = #tpu.dot_dimension_numbers<[1], [0], [0], [1], [0, 0, 1, 1], [], []>} : vector<8x64xf32>, vector<64x64xf32>, vector<8x64xf32> -> vector<8x64xf32>
    %c1_11 = arith.constant 1 : index
    %c0_12 = arith.constant 0 : index
    %c0_13 = arith.constant 0 : index
    %13 = vector.load %arg2[%c1_11, %c0_12, %c0_13] : memref<6x1x64xf32, #tpu.memory_space<vmem>>, vector<1x1x64xf32>
    %14 = vector.shape_cast %13 : vector<1x1x64xf32> to vector<1x64xf32>
    %15 = vector.broadcast %14 : vector<1x64xf32> to vector<8x64xf32>
    %16 = arith.addf %12, %15 : vector<8x64xf32>
    %cst_14 = arith.constant 0.000000e+00 : f32
    %17 = vector.broadcast %cst_14 : f32 to vector<8x64xf32>
    %18 = arith.maximumf %16, %17 : vector<8x64xf32>
    %c2 = arith.constant 2 : index
    %c0_15 = arith.constant 0 : index
    %c0_16 = arith.constant 0 : index
    %19 = vector.load %arg1[%c2, %c0_15, %c0_16] : memref<6x64x64xf32, #tpu.memory_space<vmem>>, vector<1x64x64xf32>
    %20 = vector.shape_cast %19 : vector<1x64x64xf32> to vector<64x64xf32>
    %cst_17 = arith.constant dense<0.000000e+00> : vector<8x64xf32>
    %21 = tpu.matmul %18, %20, %cst_17 {dimension_numbers = #tpu.dot_dimension_numbers<[1], [0], [0], [1], [0, 0, 1, 1], [], []>} : vector<8x64xf32>, vector<64x64xf32>, vector<8x64xf32> -> vector<8x64xf32>
    %c2_18 = arith.constant 2 : index
    %c0_19 = arith.constant 0 : index
    %c0_20 = arith.constant 0 : index
    %22 = vector.load %arg2[%c2_18, %c0_19, %c0_20] : memref<6x1x64xf32, #tpu.memory_space<vmem>>, vector<1x1x64xf32>
    %23 = vector.shape_cast %22 : vector<1x1x64xf32> to vector<1x64xf32>
    %24 = vector.broadcast %23 : vector<1x64xf32> to vector<8x64xf32>
    %25 = arith.addf %21, %24 : vector<8x64xf32>
    %cst_21 = arith.constant 0.000000e+00 : f32
    %26 = vector.broadcast %cst_21 : f32 to vector<8x64xf32>
    %27 = arith.maximumf %25, %26 : vector<8x64xf32>
    %c3 = arith.constant 3 : index
    %c0_22 = arith.constant 0 : index
    %c0_23 = arith.constant 0 : index
    %28 = vector.load %arg1[%c3, %c0_22, %c0_23] : memref<6x64x64xf32, #tpu.memory_space<vmem>>, vector<1x64x64xf32>
    %29 = vector.shape_cast %28 : vector<1x64x64xf32> to vector<64x64xf32>
    %cst_24 = arith.constant dense<0.000000e+00> : vector<8x64xf32>
    %30 = tpu.matmul %27, %29, %cst_24 {dimension_numbers = #tpu.dot_dimension_numbers<[1], [0], [0], [1], [0, 0, 1, 1], [], []>} : vector<8x64xf32>, vector<64x64xf32>, vector<8x64xf32> -> vector<8x64xf32>
    %c3_25 = arith.constant 3 : index
    %c0_26 = arith.constant 0 : index
    %c0_27 = arith.constant 0 : index
    %31 = vector.load %arg2[%c3_25, %c0_26, %c0_27] : memref<6x1x64xf32, #tpu.memory_space<vmem>>, vector<1x1x64xf32>
    %32 = vector.shape_cast %31 : vector<1x1x64xf32> to vector<1x64xf32>
    %33 = vector.broadcast %32 : vector<1x64xf32> to vector<8x64xf32>
    %34 = arith.addf %30, %33 : vector<8x64xf32>
    %cst_28 = arith.constant 0.000000e+00 : f32
    %35 = vector.broadcast %cst_28 : f32 to vector<8x64xf32>
    %36 = arith.maximumf %34, %35 : vector<8x64xf32>
    %c4 = arith.constant 4 : index
    %c0_29 = arith.constant 0 : index
    %c0_30 = arith.constant 0 : index
    %37 = vector.load %arg1[%c4, %c0_29, %c0_30] : memref<6x64x64xf32, #tpu.memory_space<vmem>>, vector<1x64x64xf32>
    %38 = vector.shape_cast %37 : vector<1x64x64xf32> to vector<64x64xf32>
    %cst_31 = arith.constant dense<0.000000e+00> : vector<8x64xf32>
    %39 = tpu.matmul %36, %38, %cst_31 {dimension_numbers = #tpu.dot_dimension_numbers<[1], [0], [0], [1], [0, 0, 1, 1], [], []>} : vector<8x64xf32>, vector<64x64xf32>, vector<8x64xf32> -> vector<8x64xf32>
    %c4_32 = arith.constant 4 : index
    %c0_33 = arith.constant 0 : index
    %c0_34 = arith.constant 0 : index
    %40 = vector.load %arg2[%c4_32, %c0_33, %c0_34] : memref<6x1x64xf32, #tpu.memory_space<vmem>>, vector<1x1x64xf32>
    %41 = vector.shape_cast %40 : vector<1x1x64xf32> to vector<1x64xf32>
    %42 = vector.broadcast %41 : vector<1x64xf32> to vector<8x64xf32>
    %43 = arith.addf %39, %42 : vector<8x64xf32>
    %cst_35 = arith.constant 0.000000e+00 : f32
    %44 = vector.broadcast %cst_35 : f32 to vector<8x64xf32>
    %45 = arith.maximumf %43, %44 : vector<8x64xf32>
    %c5 = arith.constant 5 : index
    %c0_36 = arith.constant 0 : index
    %c0_37 = arith.constant 0 : index
    %46 = vector.load %arg1[%c5, %c0_36, %c0_37] : memref<6x64x64xf32, #tpu.memory_space<vmem>>, vector<1x64x64xf32>
    %47 = vector.shape_cast %46 : vector<1x64x64xf32> to vector<64x64xf32>
    %cst_38 = arith.constant dense<0.000000e+00> : vector<8x64xf32>
    %48 = tpu.matmul %45, %47, %cst_38 {dimension_numbers = #tpu.dot_dimension_numbers<[1], [0], [0], [1], [0, 0, 1, 1], [], []>} : vector<8x64xf32>, vector<64x64xf32>, vector<8x64xf32> -> vector<8x64xf32>
    %c5_39 = arith.constant 5 : index
    %c0_40 = arith.constant 0 : index
    %c0_41 = arith.constant 0 : index
    %49 = vector.load %arg2[%c5_39, %c0_40, %c0_41] : memref<6x1x64xf32, #tpu.memory_space<vmem>>, vector<1x1x64xf32>
    %50 = vector.shape_cast %49 : vector<1x1x64xf32> to vector<1x64xf32>
    %51 = vector.broadcast %50 : vector<1x64xf32> to vector<8x64xf32>
    %52 = arith.addf %48, %51 : vector<8x64xf32>
    %53 = vector.extract_strided_slice %52 {offsets = [0, 0], sizes = [8, 1], strides = [1, 1]} : vector<8x64xf32> to vector<8x1xf32>
    %54 = vector.extract_strided_slice %52 {offsets = [0, 1], sizes = [8, 2], strides = [1, 1]} : vector<8x64xf32> to vector<8x2xf32>
    %55 = vector.extract_strided_slice %54 {offsets = [0, 0], sizes = [2, 2], strides = [1, 1]} : vector<8x2xf32> to vector<2x2xf32>
    %56 = vector.shape_cast %55 : vector<2x2xf32> to vector<1x2x2xf32>
    %cst_42 = arith.constant dense<0.000000e+00> : vector<1xf32>
    %57 = vector.multi_reduction <add>, %56, %cst_42 [1, 2] : vector<1x2x2xf32> to vector<1xf32>
    %58 = vector.shape_cast %57 : vector<1xf32> to vector<1x1x1xf32>
    %59 = vector.extract %58[0, 0, 0] : f32 from vector<1x1x1xf32>
    %cst_43 = arith.constant 2.500000e-01 : f32
    %60 = arith.mulf %59, %cst_43 : f32
    %61 = vector.broadcast %60 : f32 to vector<8x2xf32>
    %62 = arith.subf %54, %61 : vector<8x2xf32>
    %63 = vector.broadcast %53 : vector<8x1xf32> to vector<8x2xf32>
    %64 = arith.addf %63, %62 : vector<8x2xf32>
    %c0_44 = arith.constant 0 : index
    %c0_45 = arith.constant 0 : index
    %65 = vector.load %arg3[%c0_44, %c0_45] : memref<8x2xf32, #tpu.memory_space<vmem>>, vector<8x2xf32>
    tpu.vector_store %arg3[%c0_44, %c0_45], %64 {strides = array<i32>} : memref<8x2xf32, #tpu.memory_space<vmem>>, vector<8x2xf32>,
    return
  }
}

</mosaic_0001>

<llo_original>
// kernel: tpu_custom_call.1
$region0: #{tpu_custom_call.1}
  #allocation0 [shape = 'u32[]', space=smem, size = 0x4, offset = 0x4, fixed_abs, tag = 'smem constant byte address 0x4 - core index']
  #allocation1 [shape = 'u32[144,128]{1,0:T(1,128)}', space=vmem, size = 0x12000, scoped, tag = 'internal scratch']
  %s0 = inlined_call_operand.hbm [shape: f32[8,64], index: 0, kind: input, shape index: {}]
  %s1 = inlined_call_operand.hbm [shape: f32[6,64,64], index: 1, kind: input, shape index: {}]
  %s2 = inlined_call_operand.hbm [shape: f32[6,1,64], index: 2, kind: input, shape index: {}]
  %s3 = inlined_call_operand.vmem [shape: f32[8,2], index: 3, kind: output, shape index: {}]
  %s4 = sld [smem:[#allocation0]]
  $region34: #{tpu_custom_call.1} parent=0
    _
  %s6 = ssub.s32 1, %s4
  %s7 = scalar_select 0, %s6, %s4
  $region1: #{tpu_custom_call.1} parent=0
    #allocation2 [shape = 'u8[4096]{0}', space=vmem, size = 0x1000, scoped, tag = 'input window, operand 0, single buffered']
    #allocation3 [shape = 's32[1]{0}', space=sflag, size = 0x4, scoped, tag = 'scoped memory for tpu_custom_call.1']
    #allocation4 [shape = 'u8[196608]{0}', space=vmem, size = 0x30000, scoped, tag = 'input window, operand 1, single buffered']
    #allocation5 [shape = 's32[1]{0}', space=sflag, size = 0x4, scoped, tag = 'scoped memory for tpu_custom_call.1']
    #allocation6 [shape = 'u8[3072]{0}', space=vmem, size = 0xc00, scoped, tag = 'input window, operand 2, single buffered']
    %8 = vsyncpa [#allocation3], 0
    %9 = vsyncpa [#allocation5], 0
    // Predicated region
    $region2: #{tpu_custom_call.1} parent=1 // pred_check
      _
    $region3: #{tpu_custom_call.1} parent=1 // pred_check_branch
      %11 = sbr.rel (0) target = $region5
    $region4: #{tpu_custom_call.1} parent=1 // pred_region
      %s13 = ssub.s32 128, 128
      %14 = vsyncadd [#allocation3], %s13
      %s16 = sshll.u32 [#allocation2], 4
      %s17 = int_to_ptr.vmem [resolvable:$true] %s16
      %19 = dma.hbm_to_vmem [thread:$0]  %s0, 128, %s17, [#allocation3]
    $region5: #{tpu_custom_call.1} parent=1 // pred_fallthru
      _
    // Predicated region
    $region6: #{tpu_custom_call.1} parent=1 // pred_check
      _
    $region7: #{tpu_custom_call.1} parent=1 // pred_check_branch
      %21 = sbr.rel (0) target = $region9
    $region8: #{tpu_custom_call.1} parent=1 // pred_region
      %s23 = ssub.s32 6144, 6144
      %24 = vsyncadd [#allocation5], %s23
      %s25 = sshll.u32 [#allocation4], 4
      %s26 = int_to_ptr.vmem [resolvable:$true] %s25
      %31 = dma.hbm_to_vmem [thread:$0]  %s1, 6144, %s26, [#allocation5], 128, 128, 8
    $region9: #{tpu_custom_call.1} parent=1 // pred_fallthru
      _
    // Predicated region
    $region10: #{tpu_custom_call.1} parent=1 // pred_check
      _
    $region11: #{tpu_custom_call.1} parent=1 // pred_check_branch
      %33 = sbr.rel (0) target = $region13
    $region12: #{tpu_custom_call.1} parent=1 // pred_region
      %s35 = ssub.s32 96, 96
      %36 = vsyncadd [#allocation5], %s35
      %s37 = sshll.u32 [#allocation6], 4
      %s38 = int_to_ptr.vmem [resolvable:$true] %s37
      %43 = dma.hbm_to_vmem [thread:$0]  %s2, 96, %s38, [#allocation5], 16, 16, 1
    $region13: #{tpu_custom_call.1} parent=1 // pred_fallthru
      _
    // Predicated region
    $region14: #{tpu_custom_call.1} parent=1 // pred_check
      _
    $region15: #{tpu_custom_call.1} parent=1 // pred_check_branch
      %45 = sbr.rel (0) target = $region17
    $region16: #{tpu_custom_call.1} parent=1 // pred_region
      %46 = dma.done [#allocation3], 128
    $region17: #{tpu_custom_call.1} parent=1 // pred_fallthru
      _
    // Predicated region
    $region18: #{tpu_custom_call.1} parent=1 // pred_check
      _
    $region19: #{tpu_custom_call.1} parent=1 // pred_check_branch
      %48 = sbr.rel (0) target = $region21
    $region20: #{tpu_custom_call.1} parent=1 // pred_region
      %49 = dma.done [#allocation5], 6144
    $region21: #{tpu_custom_call.1} parent=1 // pred_fallthru
      _
    // Predicated region
    $region22: #{tpu_custom_call.1} parent=1 // pred_check
      _
    $region23: #{tpu_custom_call.1} parent=1 // pred_check_branch
      %51 = sbr.rel (0) target = $region25
    $region24: #{tpu_custom_call.1} parent=1 // pred_region
      %52 = dma.done [#allocation5], 96
    $region25: #{tpu_custom_call.1} parent=1 // pred_fallthru
      _
    %v53 = vld [vmem:[#allocation2] sm:$0xff]
    %v54 = vld [vmem:[#allocation4] sm:$0xff]
    %v55 = vld [vmem:[#allocation4 + $0x8] sm:$0xff]
    %v56 = vld [vmem:[#allocation4 + $0x10] sm:$0xff]
    %v57 = vld [vmem:[#allocation4 + $0x18] sm:$0xff]
    %v58 = vld [vmem:[#allocation4 + $0x20] sm:$0xff]
    %v59 = vld [vmem:[#allocation4 + $0x28] sm:$0xff]
    %v60 = vld [vmem:[#allocation4 + $0x30] sm:$0xff]
    %v61 = vld [vmem:[#allocation4 + $0x38] sm:$0xff]
    %v62 = vld [vmem:[#allocation6] sm:$0x1]
    %v64 = vlaneseq
    %v65 = vshrl.u32 %v64, 7
    %v66 = vsub.s32 0, %v65
    %v67 = vrot.slane %v62, %v66
    %vm69 = vcmask 523264
    %v71 = vsel %vm69, %v53, 0
    %73 = vmatprep.subr.mxu0 0.0
    %74 = vmatpush1.msra.mxu0 0.0
    %75 = vmatprep.subr.mxu0 0.0
    %76 = vmatpush1.msra.mxu0 0.0
    %77 = vmatprep.subr.mxu0 0.0
    %78 = vmatpush1.msra.mxu0 0.0
    %79 = vmatprep.subr.mxu0 0.0
    %80 = vmatpush1.msra.mxu0 0.0
    %81 = vmatprep.subr.mxu0 0.0
    %82 = vmatpush1.msra.mxu0 0.0
    %83 = vmatprep.subr.mxu0 0.0
    %84 = vmatpush1.msra.mxu0 0.0
    %85 = vmatprep.subr.mxu0 0.0
    %86 = vmatpush1.msra.mxu0 0.0
    %87 = vmatprep.subr.mxu0 0.0
    %88 = vmatpush1.msra.mxu0 0.0
    %89 = vmatprep.subr.mxu0 0.0
    %90 = vmatpush1.msra.mxu0 %v61
    %91 = vmatprep.subr.mxu0 0.0
    %92 = vmatpush1.msra.mxu0 %v60
    %93 = vmatprep.subr.mxu0 0.0
    %94 = vmatpush1.msra.mxu0 %v59
    %95 = vmatprep.subr.mxu0 0.0
    %96 = vmatpush1.msra.mxu0 %v58
    %97 = vmatprep.subr.mxu0 0.0
    %98 = vmatpush1.msra.mxu0 %v57
    %99 = vmatprep.subr.mxu0 0.0
    %100 = vmatpush1.msra.mxu0 %v56
    %101 = vmatprep.subr.mxu0 0.0
    %102 = vmatpush1.msra.mxu0 %v55
    %103 = vmatprep.subr.mxu0 0.0
    %104 = vmatpush1.msra.mxu0 %v54
    %105 = vmatprep.subr.mxu0 0.0
    %106 = vmatpush2.msra.mxu0 0.0
    %107 = vmatprep.subr.mxu0 0.0
    %108 = vmatpush2.msra.mxu0 0.0
    %109 = vmatprep.subr.mxu0 0.0
    %110 = vmatpush2.msra.mxu0 0.0
    %111 = vmatprep.subr.mxu0 0.0
    %112 = vmatpush2.msra.mxu0 0.0
    %113 = vmatprep.subr.mxu0 0.0
    %114 = vmatpush2.msra.mxu0 0.0
    %115 = vmatprep.subr.mxu0 0.0
    %116 = vmatpush2.msra.mxu0 0.0
    %117 = vmatprep.subr.mxu0 0.0
    %118 = vmatpush2.msra.mxu0 0.0
    %119 = vmatprep.subr.mxu0 0.0
    %120 = vmatpush2.msra.mxu0 0.0
    %121 = vmatprep.subr.mxu0 0.0
    %122 = vmatpush2.msra.mxu0 0.0
    %123 = vmatprep.subr.mxu0 0.0
    %124 = vmatpush2.msra.mxu0 0.0
    %125 = vmatprep.subr.mxu0 0.0
    %126 = vmatpush2.msra.mxu0 0.0
    %127 = vmatprep.subr.mxu0 0.0
    %128 = vmatpush2.msra.mxu0 0.0
    %129 = vmatprep.subr.mxu0 0.0
    %130 = vmatpush2.msra.mxu0 0.0
    %131 = vmatprep.subr.mxu0 0.0
    %132 = vmatpush2.msra.mxu0 0.0
    %133 = vmatprep.subr.mxu0 0.0
    %134 = vmatpush2.msra.mxu0 0.0
    %135 = vmatprep.subr.mxu0 0.0
    %136 = vmatpush2.msra.mxu0 0.0
    %137 = vmatprep.mubr.f32.mxu0 0.0
    %138 = vmatmul.mubr.f32.gmra.mxu0 %v71
    %v139 = vpop.f32.mrf.mxu0
    %v140 = vadd.f32 %v67, %v139
    %v141 = vpop.f32.mrf.mxu0
    %142 = vdwg.mxu0
    %v143 = vmax.f32 %v140, 0.0
    %s144 = scalar_lea.vmem [#allocation4], 64
    %v145 = vld [vmem:[%s144] sm:$0xff]
    %v146 = vld [vmem:[%s144 + $0x8] sm:$0xff]
    %v147 = vld [vmem:[%s144 + $0x10] sm:$0xff]
    %v148 = vld [vmem:[%s144 + $0x18] sm:$0xff]
    %v149 = vld [vmem:[%s144 + $0x20] sm:$0xff]
    %v150 = vld [vmem:[%s144 + $0x28] sm:$0xff]
    %v151 = vld [vmem:[%s144 + $0x30] sm:$0xff]
    %v152 = vld [vmem:[%s144 + $0x38] sm:$0xff]
    %s153 = scalar_lea.vmem [#allocation6], 1
    %v154 = vld [vmem:[%s153] sm:$0x1]
    %v156 = vlaneseq
    %v157 = vshrl.u32 %v156, 7
    %v158 = vsub.s32 0, %v157
    %v159 = vrot.slane %v154, %v158
    %v162 = vsel %vm69, %v143, 0
    %164 = vmatprep.subr.mxu0 0.0
    %165 = vmatpush1.msra.mxu0 0.0
    %166 = vmatprep.subr.mxu0 0.0
    %167 = vmatpush1.msra.mxu0 0.0
    %168 = vmatprep.subr.mxu0 0.0
    %169 = vmatpush1.msra.mxu0 0.0
    %170 = vmatprep.subr.mxu0 0.0
    %171 = vmatpush1.msra.mxu0 0.0
    %172 = vmatprep.subr.mxu0 0.0
    %173 = vmatpush1.msra.mxu0 0.0
    %174 = vmatprep.subr.mxu0 0.0
    %175 = vmatpush1.msra.mxu0 0.0
    %176 = vmatprep.subr.mxu0 0.0
    %177 = vmatpush1.msra.mxu0 0.0
    %178 = vmatprep.subr.mxu0 0.0
    %179 = vmatpush1.msra.mxu0 0.0
    %180 = vmatprep.subr.mxu0 0.0
    %181 = vmatpush1.msra.mxu0 %v152
    %182 = vmatprep.subr.mxu0 0.0
    %183 = vmatpush1.msra.mxu0 %v151
    %184 = vmatprep.subr.mxu0 0.0
    %185 = vmatpush1.msra.mxu0 %v150
    %186 = vmatprep.subr.mxu0 0.0
    %187 = vmatpush1.msra.mxu0 %v149
    %188 = vmatprep.subr.mxu0 0.0
    %189 = vmatpush1.msra.mxu0 %v148
    %190 = vmatprep.subr.mxu0 0.0
    %191 = vmatpush1.msra.mxu0 %v147
    %192 = vmatprep.subr.mxu0 0.0
    %193 = vmatpush1.msra.mxu0 %v146
    %194 = vmatprep.subr.mxu0 0.0
    %195 = vmatpush1.msra.mxu0 %v145
    %196 = vmatprep.subr.mxu0 0.0
    %197 = vmatpush2.msra.mxu0 0.0
    %198 = vmatprep.subr.mxu0 0.0
    %199 = vmatpush2.msra.mxu0 0.0
    %200 = vmatprep.subr.mxu0 0.0
    %201 = vmatpush2.msra.mxu0 0.0
    %202 = vmatprep.subr.mxu0 0.0
    %203 = vmatpush2.msra.mxu0 0.0
    %204 = vmatprep.subr.mxu0 0.0
    %205 = vmatpush2.msra.mxu0 0.0
    %206 = vmatprep.subr.mxu0 0.0
    %207 = vmatpush2.msra.mxu0 0.0
    %208 = vmatprep.subr.mxu0 0.0
    %209 = vmatpush2.msra.mxu0 0.0
    %210 = vmatprep.subr.mxu0 0.0
    %211 = vmatpush2.msra.mxu0 0.0
    %212 = vmatprep.subr.mxu0 0.0
    %213 = vmatpush2.msra.mxu0 0.0
    %214 = vmatprep.subr.mxu0 0.0
    %215 = vmatpush2.msra.mxu0 0.0
    %216 = vmatprep.subr.mxu0 0.0
    %217 = vmatpush2.msra.mxu0 0.0
    %218 = vmatprep.subr.mxu0 0.0
    %219 = vmatpush2.msra.mxu0 0.0
    %220 = vmatprep.subr.mxu0 0.0
    %221 = vmatpush2.msra.mxu0 0.0
    %222 = vmatprep.subr.mxu0 0.0
    %223 = vmatpush2.msra.mxu0 0.0
    %224 = vmatprep.subr.mxu0 0.0
    %225 = vmatpush2.msra.mxu0 0.0
    %226 = vmatprep.subr.mxu0 0.0
    %227 = vmatpush2.msra.mxu0 0.0
    %228 = vmatprep.mubr.f32.mxu0 0.0
    %229 = vmatmul.mubr.f32.gmra.mxu0 %v162
    %v230 = vpop.f32.mrf.mxu0
    %v231 = vadd.f32 %v159, %v230
    %v232 = vpop.f32.mrf.mxu0
    %233 = vdwg.mxu0
    %v234 = vmax.f32 %v231, 0.0
    %s235 = scalar_lea.vmem [#allocation4], 128
    %v236 = vld [vmem:[%s235] sm:$0xff]
    %v237 = vld [vmem:[%s235 + $0x8] sm:$0xff]
    %v238 = vld [vmem:[%s235 + $0x10] sm:$0xff]
    %v239 = vld [vmem:[%s235 + $0x18] sm:$0xff]
    %v240 = vld [vmem:[%s235 + $0x20] sm:$0xff]
    %v241 = vld [vmem:[%s235 + $0x28] sm:$0xff]
    %v242 = vld [vmem:[%s235 + $0x30] sm:$0xff]
    %v243 = vld [vmem:[%s235 + $0x38] sm:$0xff]
    %s244 = scalar_lea.vmem [#allocation6], 2
    %v245 = vld [vmem:[%s244] sm:$0x1]
    %v247 = vlaneseq
    %v248 = vshrl.u32 %v247, 7
    %v249 = vsub.s32 0, %v248
    %v250 = vrot.slane %v245, %v249
    %v253 = vsel %vm69, %v234, 0
    %255 = vmatprep.subr.mxu0 0.0
    %256 = vmatpush1.msra.mxu0 0.0
    %257 = vmatprep.subr.mxu0 0.0
    %258 = vmatpush1.msra.mxu0 0.0
    %259 = vmatprep.subr.mxu0 0.0
    %260 = vmatpush1.msra.mxu0 0.0
    %261 = vmatprep.subr.mxu0 0.0
    %262 = vmatpush1.msra.mxu0 0.0
    %263 = vmatprep.subr.mxu0 0.0
    %264 = vmatpush1.msra.mxu0 0.0
    %265 = vmatprep.subr.mxu0 0.0
    %266 = vmatpush1.msra.mxu0 0.0
    %267 = vmatprep.subr.mxu0 0.0
    %268 = vmatpush1.msra.mxu0 0.0
    %269 = vmatprep.subr.mxu0 0.0
    %270 = vmatpush1.msra.mxu0 0.0
    %271 = vmatprep.subr.mxu0 0.0
    %272 = vmatpush1.msra.mxu0 %v243
    %273 = vmatprep.subr.mxu0 0.0
    %274 = vmatpush1.msra.mxu0 %v242
    %275 = vmatprep.subr.mxu0 0.0
    %276 = vmatpush1.msra.mxu0 %v241
    %277 = vmatprep.subr.mxu0 0.0
    %278 = vmatpush1.msra.mxu0 %v240
    %279 = vmatprep.subr.mxu0 0.0
    %280 = vmatpush1.msra.mxu0 %v239
    %281 = vmatprep.subr.mxu0 0.0
    %282 = vmatpush1.msra.mxu0 %v238
    %283 = vmatprep.subr.mxu0 0.0
    %284 = vmatpush1.msra.mxu0 %v237
    %285 = vmatprep.subr.mxu0 0.0
    %286 = vmatpush1.msra.mxu0 %v236
    %287 = vmatprep.subr.mxu0 0.0
    %288 = vmatpush2.msra.mxu0 0.0
    %289 = vmatprep.subr.mxu0 0.0
    %290 = vmatpush2.msra.mxu0 0.0
    %291 = vmatprep.subr.mxu0 0.0
    %292 = vmatpush2.msra.mxu0 0.0
    %293 = vmatprep.subr.mxu0 0.0
    %294 = vmatpush2.msra.mxu0 0.0
    %295 = vmatprep.subr.mxu0 0.0
    %296 = vmatpush2.msra.mxu0 0.0
    %297 = vmatprep.subr.mxu0 0.0
    %298 = vmatpush2.msra.mxu0 0.0
    %299 = vmatprep.subr.mxu0 0.0
    %300 = vmatpush2.msra.mxu0 0.0
    %301 = vmatprep.subr.mxu0 0.0
    %302 = vmatpush2.msra.mxu0 0.0
    %303 = vmatprep.subr.mxu0 0.0
    %304 = vmatpush2.msra.mxu0 0.0
    %305 = vmatprep.subr.mxu0 0.0
    %306 = vmatpush2.msra.mxu0 0.0
    %307 = vmatprep.subr.mxu0 0.0
    %308 = vmatpush2.msra.mxu0 0.0
    %309 = vmatprep.subr.mxu0 0.0
    %310 = vmatpush2.msra.mxu0 0.0
    %311 = vmatprep.subr.mxu0 0.0
    %312 = vmatpush2.msra.mxu0 0.0
    %313 = vmatprep.subr.mxu0 0.0
    %314 = vmatpush2.msra.mxu0 0.0
    %315 = vmatprep.subr.mxu0 0.0
    %316 = vmatpush2.msra.mxu0 0.0
    %317 = vmatprep.subr.mxu0 0.0
    %318 = vmatpush2.msra.mxu0 0.0
    %319 = vmatprep.mubr.f32.mxu0 0.0
    %320 = vmatmul.mubr.f32.gmra.mxu0 %v253
    %v321 = vpop.f32.mrf.mxu0
    %v322 = vadd.f32 %v250, %v321
    %v323 = vpop.f32.mrf.mxu0
    %324 = vdwg.mxu0
    %v325 = vmax.f32 %v322, 0.0
    %s326 = scalar_lea.vmem [#allocation4], 192
    %v327 = vld [vmem:[%s326] sm:$0xff]
    %v328 = vld [vmem:[%s326 + $0x8] sm:$0xff]
    %v329 = vld [vmem:[%s326 + $0x10] sm:$0xff]
    %v330 = vld [vmem:[%s326 + $0x18] sm:$0xff]
    %v331 = vld [vmem:[%s326 + $0x20] sm:$0xff]
    %v332 = vld [vmem:[%s326 + $0x28] sm:$0xff]
    %v333 = vld [vmem:[%s326 + $0x30] sm:$0xff]
    %v334 = vld [vmem:[%s326 + $0x38] sm:$0xff]
    %s335 = scalar_lea.vmem [#allocation6], 3
    %v336 = vld [vmem:[%s335] sm:$0x1]
    %v338 = vlaneseq
    %v339 = vshrl.u32 %v338, 7
    %v340 = vsub.s32 0, %v339
    %v341 = vrot.slane %v336, %v340
    %v344 = vsel %vm69, %v325, 0
    %346 = vmatprep.subr.mxu0 0.0
    %347 = vmatpush1.msra.mxu0 0.0
    %348 = vmatprep.subr.mxu0 0.0
    %349 = vmatpush1.msra.mxu0 0.0
    %350 = vmatprep.subr.mxu0 0.0
    %351 = vmatpush1.msra.mxu0 0.0
    %352 = vmatprep.subr.mxu0 0.0
    %353 = vmatpush1.msra.mxu0 0.0
    %354 = vmatprep.subr.mxu0 0.0
    %355 = vmatpush1.msra.mxu0 0.0
    %356 = vmatprep.subr.mxu0 0.0
    %357 = vmatpush1.msra.mxu0 0.0
    %358 = vmatprep.subr.mxu0 0.0
    %359 = vmatpush1.msra.mxu0 0.0
    %360 = vmatprep.subr.mxu0 0.0
    %361 = vmatpush1.msra.mxu0 0.0
    %362 = vmatprep.subr.mxu0 0.0
    %363 = vmatpush1.msra.mxu0 %v334
    %364 = vmatprep.subr.mxu0 0.0
    %365 = vmatpush1.msra.mxu0 %v333
    %366 = vmatprep.subr.mxu0 0.0
    %367 = vmatpush1.msra.mxu0 %v332
    %368 = vmatprep.subr.mxu0 0.0
    %369 = vmatpush1.msra.mxu0 %v331
    %370 = vmatprep.subr.mxu0 0.0
    %371 = vmatpush1.msra.mxu0 %v330
    %372 = vmatprep.subr.mxu0 0.0
    %373 = vmatpush1.msra.mxu0 %v329
    %374 = vmatprep.subr.mxu0 0.0
    %375 = vmatpush1.msra.mxu0 %v328
    %376 = vmatprep.subr.mxu0 0.0
    %377 = vmatpush1.msra.mxu0 %v327
    %378 = vmatprep.subr.mxu0 0.0
    %379 = vmatpush2.msra.mxu0 0.0
    %380 = vmatprep.subr.mxu0 0.0
    %381 = vmatpush2.msra.mxu0 0.0
    %382 = vmatprep.subr.mxu0 0.0
    %383 = vmatpush2.msra.mxu0 0.0
    %384 = vmatprep.subr.mxu0 0.0
    %385 = vmatpush2.msra.mxu0 0.0
    %386 = vmatprep.subr.mxu0 0.0
    %387 = vmatpush2.msra.mxu0 0.0
    %388 = vmatprep.subr.mxu0 0.0
    %389 = vmatpush2.msra.mxu0 0.0
    %390 = vmatprep.subr.mxu0 0.0
    %391 = vmatpush2.msra.mxu0 0.0
    %392 = vmatprep.subr.mxu0 0.0
    %393 = vmatpush2.msra.mxu0 0.0
    %394 = vmatprep.subr.mxu0 0.0
    %395 = vmatpush2.msra.mxu0 0.0
    %396 = vmatprep.subr.mxu0 0.0
    %397 = vmatpush2.msra.mxu0 0.0
    %398 = vmatprep.subr.mxu0 0.0
    %399 = vmatpush2.msra.mxu0 0.0
    %400 = vmatprep.subr.mxu0 0.0
    %401 = vmatpush2.msra.mxu0 0.0
    %402 = vmatprep.subr.mxu0 0.0
    %403 = vmatpush2.msra.mxu0 0.0
    %404 = vmatprep.subr.mxu0 0.0
    %405 = vmatpush2.msra.mxu0 0.0
    %406 = vmatprep.subr.mxu0 0.0
    %407 = vmatpush2.msra.mxu0 0.0
    %408 = vmatprep.subr.mxu0 0.0
    %409 = vmatpush2.msra.mxu0 0.0
    %410 = vmatprep.mubr.f32.mxu0 0.0
    %411 = vmatmul.mubr.f32.gmra.mxu0 %v344
    %v412 = vpop.f32.mrf.mxu0
    %v413 = vadd.f32 %v341, %v412
    %v414 = vpop.f32.mrf.mxu0
    %415 = vdwg.mxu0
    %v416 = vmax.f32 %v413, 0.0
    %s417 = scalar_lea.vmem [#allocation4], 256
    %v418 = vld [vmem:[%s417] sm:$0xff]
    %v419 = vld [vmem:[%s417 + $0x8] sm:$0xff]
    %v420 = vld [vmem:[%s417 + $0x10] sm:$0xff]
    %v421 = vld [vmem:[%s417 + $0x18] sm:$0xff]
    %v422 = vld [vmem:[%s417 + $0x20] sm:$0xff]
    %v423 = vld [vmem:[%s417 + $0x28] sm:$0xff]
    %v424 = vld [vmem:[%s417 + $0x30] sm:$0xff]
    %v425 = vld [vmem:[%s417 + $0x38] sm:$0xff]
    %s426 = scalar_lea.vmem [#allocation6], 4
    %v427 = vld [vmem:[%s426] sm:$0x1]
    %v429 = vlaneseq
    %v430 = vshrl.u32 %v429, 7
    %v431 = vsub.s32 0, %v430
    %v432 = vrot.slane %v427, %v431
    %v435 = vsel %vm69, %v416, 0
    %437 = vmatprep.subr.mxu0 0.0
    %438 = vmatpush1.msra.mxu0 0.0
    %439 = vmatprep.subr.mxu0 0.0
    %440 = vmatpush1.msra.mxu0 0.0
    %441 = vmatprep.subr.mxu0 0.0
    %442 = vmatpush1.msra.mxu0 0.0
    %443 = vmatprep.subr.mxu0 0.0
    %444 = vmatpush1.msra.mxu0 0.0
    %445 = vmatprep.subr.mxu0 0.0
    %446 = vmatpush1.msra.mxu0 0.0
    %447 = vmatprep.subr.mxu0 0.0
    %448 = vmatpush1.msra.mxu0 0.0
    %449 = vmatprep.subr.mxu0 0.0
    %450 = vmatpush1.msra.mxu0 0.0
    %451 = vmatprep.subr.mxu0 0.0
    %452 = vmatpush1.msra.mxu0 0.0
    %453 = vmatprep.subr.mxu0 0.0
    %454 = vmatpush1.msra.mxu0 %v425
    %455 = vmatprep.subr.mxu0 0.0
    %456 = vmatpush1.msra.mxu0 %v424
    %457 = vmatprep.subr.mxu0 0.0
    %458 = vmatpush1.msra.mxu0 %v423
    %459 = vmatprep.subr.mxu0 0.0
    %460 = vmatpush1.msra.mxu0 %v422
    %461 = vmatprep.subr.mxu0 0.0
    %462 = vmatpush1.msra.mxu0 %v421
    %463 = vmatprep.subr.mxu0 0.0
    %464 = vmatpush1.msra.mxu0 %v420
    %465 = vmatprep.subr.mxu0 0.0
    %466 = vmatpush1.msra.mxu0 %v419
    %467 = vmatprep.subr.mxu0 0.0
    %468 = vmatpush1.msra.mxu0 %v418
    %469 = vmatprep.subr.mxu0 0.0
    %470 = vmatpush2.msra.mxu0 0.0
    %471 = vmatprep.subr.mxu0 0.0
    %472 = vmatpush2.msra.mxu0 0.0
    %473 = vmatprep.subr.mxu0 0.0
    %474 = vmatpush2.msra.mxu0 0.0
    %475 = vmatprep.subr.mxu0 0.0
    %476 = vmatpush2.msra.mxu0 0.0
    %477 = vmatprep.subr.mxu0 0.0
    %478 = vmatpush2.msra.mxu0 0.0
    %479 = vmatprep.subr.mxu0 0.0
    %480 = vmatpush2.msra.mxu0 0.0
    %481 = vmatprep.subr.mxu0 0.0
    %482 = vmatpush2.msra.mxu0 0.0
    %483 = vmatprep.subr.mxu0 0.0
    %484 = vmatpush2.msra.mxu0 0.0
    %485 = vmatprep.subr.mxu0 0.0
    %486 = vmatpush2.msra.mxu0 0.0
    %487 = vmatprep.subr.mxu0 0.0
    %488 = vmatpush2.msra.mxu0 0.0
    %489 = vmatprep.subr.mxu0 0.0
    %490 = vmatpush2.msra.mxu0 0.0
    %491 = vmatprep.subr.mxu0 0.0
    %492 = vmatpush2.msra.mxu0 0.0
    %493 = vmatprep.subr.mxu0 0.0
    %494 = vmatpush2.msra.mxu0 0.0
    %495 = vmatprep.subr.mxu0 0.0
    %496 = vmatpush2.msra.mxu0 0.0
    %497 = vmatprep.subr.mxu0 0.0
    %498 = vmatpush2.msra.mxu0 0.0
    %499 = vmatprep.subr.mxu0 0.0
    %500 = vmatpush2.msra.mxu0 0.0
    %501 = vmatprep.mubr.f32.mxu0 0.0
    %502 = vmatmul.mubr.f32.gmra.mxu0 %v435
    %v503 = vpop.f32.mrf.mxu0
    %v504 = vadd.f32 %v432, %v503
    %v505 = vpop.f32.mrf.mxu0
    %506 = vdwg.mxu0
    %v507 = vmax.f32 %v504, 0.0
    %s508 = scalar_lea.vmem [#allocation4], 320
    %v509 = vld [vmem:[%s508] sm:$0xff]
    %v510 = vld [vmem:[%s508 + $0x8] sm:$0xff]
    %v511 = vld [vmem:[%s508 + $0x10] sm:$0xff]
    %v512 = vld [vmem:[%s508 + $0x18] sm:$0xff]
    %v513 = vld [vmem:[%s508 + $0x20] sm:$0xff]
    %v514 = vld [vmem:[%s508 + $0x28] sm:$0xff]
    %v515 = vld [vmem:[%s508 + $0x30] sm:$0xff]
    %v516 = vld [vmem:[%s508 + $0x38] sm:$0xff]
    %s517 = scalar_lea.vmem [#allocation6], 5
    %v518 = vld [vmem:[%s517] sm:$0x1]
    %v520 = vlaneseq
    %v521 = vshrl.u32 %v520, 7
    %v522 = vsub.s32 0, %v521
    %v523 = vrot.slane %v518, %v522
    %v526 = vsel %vm69, %v507, 0
    %528 = vmatprep.subr.mxu0 0.0
    %529 = vmatpush1.msra.mxu0 0.0
    %530 = vmatprep.subr.mxu0 0.0
    %531 = vmatpush1.msra.mxu0 0.0
    %532 = vmatprep.subr.mxu0 0.0
    %533 = vmatpush1.msra.mxu0 0.0
    %534 = vmatprep.subr.mxu0 0.0
    %535 = vmatpush1.msra.mxu0 0.0
    %536 = vmatprep.subr.mxu0 0.0
    %537 = vmatpush1.msra.mxu0 0.0
    %538 = vmatprep.subr.mxu0 0.0
    %539 = vmatpush1.msra.mxu0 0.0
    %540 = vmatprep.subr.mxu0 0.0
    %541 = vmatpush1.msra.mxu0 0.0
    %542 = vmatprep.subr.mxu0 0.0
    %543 = vmatpush1.msra.mxu0 0.0
    %544 = vmatprep.subr.mxu0 0.0
    %545 = vmatpush1.msra.mxu0 %v516
    %546 = vmatprep.subr.mxu0 0.0
    %547 = vmatpush1.msra.mxu0 %v515
    %548 = vmatprep.subr.mxu0 0.0
    %549 = vmatpush1.msra.mxu0 %v514
    %550 = vmatprep.subr.mxu0 0.0
    %551 = vmatpush1.msra.mxu0 %v513
    %552 = vmatprep.subr.mxu0 0.0
    %553 = vmatpush1.msra.mxu0 %v512
    %554 = vmatprep.subr.mxu0 0.0
    %555 = vmatpush1.msra.mxu0 %v511
    %556 = vmatprep.subr.mxu0 0.0
    %557 = vmatpush1.msra.mxu0 %v510
    %558 = vmatprep.subr.mxu0 0.0
    %559 = vmatpush1.msra.mxu0 %v509
    %560 = vmatprep.subr.mxu0 0.0
    %561 = vmatpush2.msra.mxu0 0.0
    %562 = vmatprep.subr.mxu0 0.0
    %563 = vmatpush2.msra.mxu0 0.0
    %564 = vmatprep.subr.mxu0 0.0
    %565 = vmatpush2.msra.mxu0 0.0
    %566 = vmatprep.subr.mxu0 0.0
    %567 = vmatpush2.msra.mxu0 0.0
    %568 = vmatprep.subr.mxu0 0.0
    %569 = vmatpush2.msra.mxu0 0.0
    %570 = vmatprep.subr.mxu0 0.0
    %571 = vmatpush2.msra.mxu0 0.0
    %572 = vmatprep.subr.mxu0 0.0
    %573 = vmatpush2.msra.mxu0 0.0
    %574 = vmatprep.subr.mxu0 0.0
    %575 = vmatpush2.msra.mxu0 0.0
    %576 = vmatprep.subr.mxu0 0.0
    %577 = vmatpush2.msra.mxu0 0.0
    %578 = vmatprep.subr.mxu0 0.0
    %579 = vmatpush2.msra.mxu0 0.0
    %580 = vmatprep.subr.mxu0 0.0
    %581 = vmatpush2.msra.mxu0 0.0
    %582 = vmatprep.subr.mxu0 0.0
    %583 = vmatpush2.msra.mxu0 0.0
    %584 = vmatprep.subr.mxu0 0.0
    %585 = vmatpush2.msra.mxu0 0.0
    %586 = vmatprep.subr.mxu0 0.0
    %587 = vmatpush2.msra.mxu0 0.0
    %588 = vmatprep.subr.mxu0 0.0
    %589 = vmatpush2.msra.mxu0 0.0
    %590 = vmatprep.subr.mxu0 0.0
    %591 = vmatpush2.msra.mxu0 0.0
    %592 = vmatprep.mubr.f32.mxu0 0.0
    %593 = vmatmul.mubr.f32.gmra.mxu0 %v526
    %v594 = vpop.f32.mrf.mxu0
    %v595 = vadd.f32 %v523, %v594
    %v596 = vpop.f32.mrf.mxu0
    %597 = vdwg.mxu0
    %599 = vrot.lane.b32.xlu0 %v595, 127
    %v600 = vpop.permute.xlu0 %599
    %vm602 = vcmask 9216
    %v603 = vsel %vm602, %v600, 0.0
    %604 = vadd.xlane.f32.xlu0 %v603
    %v605 = vpop.xlane.xlu0 %604
    %v606 = vrot.slane %v605, 4
    %v607 = vadd.f32 %v605, %v606
    %v608 = vrot.slane %v607, 2
    %v609 = vadd.f32 %v607, %v608
    %v610 = vrot.slane %v609, 1
    %v611 = vadd.f32 %v609, %v610
    %s612 = vtos %v611
    %s613 = smul.f32 %s612, 0.25
    %v614 = vstv %s613
    %v615 = vsub.f32 %v595, %v614
    %616 = vset.pattern.permute.xlu0 0
    %617 = vperm.xlu0 %616, %v595
    %v618 = vpop.permute.xlu0 %617
    %v620 = vadd.f32 %v618, %v615
    %622 = vrot.lane.b32.xlu0 %v620, 127
    %v623 = vpop.permute.xlu0 %622
    %vm625 = vcmask 15360
    %626 = vst.msk [vmem:[%s3] sm:$0xff] %vm625, %v623
    // Predicated region
    $region26: #{tpu_custom_call.1} parent=1 // pred_check
      _
    $region27: #{tpu_custom_call.1} parent=1 // pred_check_branch
      %628 = sbr.rel (0) target = $region29
    $region28: #{tpu_custom_call.1} parent=1 // pred_region
      _
    $region29: #{tpu_custom_call.1} parent=1 // pred_fallthru
      _
    // Predicated region
    $region30: #{tpu_custom_call.1} parent=1 // pred_check
      _
    $region31: #{tpu_custom_call.1} parent=1 // pred_check_branch
      %630 = sbr.rel (0) target = $region33
    $region32: #{tpu_custom_call.1} parent=1 // pred_region
      _
    $region33: #{tpu_custom_call.1} parent=1 // pred_fallthru
      _
    %631 = vsyncpa [#allocation3], 1
    %632 = vsyncpa [#allocation5], 1

</llo_original>
